<compile_context>
chip_gen: v7x
topology: tpu7x:2x2x1
jax: 0.10.0
libtpu: 0.0.40
codegen_flags: <defaults>
</compile_context>

<pallas_src>
import functools

import jax
import jax.numpy as jnp
from jax.experimental import pallas as pl
from jax.experimental.pallas import tpu as pltpu

EPS = 1e-5


def _unit_ena_kernel(x_ref, w_ref, s1_ref, b1_ref, s2_ref, b2_ref, alpha_ref,
                     o_ref, *, pool_axis, c_mid):
    # x_ref:        (1, A0, A1, C_in)  f32 block; pooled axis is `pool_axis` of (A0, A1)
    # w_ref:        (C_in, C_mid)      bf16
    # s1/b1, s2/b2: (1, C_mid)         f32 folded BatchNorm (eval), pre-split halves
    # alpha_ref:    (1,)               f32 PReLU slope in SMEM
    # o_ref:        (1, A0, A1, 2*C_mid)
    a0 = x_ref.shape[1]
    a1 = x_ref.shape[2]
    c_in = x_ref.shape[3]

    x = x_ref[0]                                     # (A0, A1, C_in) f32
    # Reshape while still f32 (8-sublane layout), then cast to bf16 for the MXU.
    x2d = x.reshape(a0 * a1, c_in).astype(jnp.bfloat16)
    w = w_ref[...]                                   # (C_in, C_mid) bf16

    # --- encoder: one tall matmul on the MXU, f32 accumulation ---
    z = jnp.dot(x2d, w, preferred_element_type=jnp.float32)   # (A0*A1, C_mid)
    z = z.reshape(a0, a1, c_mid)                                # (A0, A1, C_mid)

    # set max-pool over the target-vertex axis (fully contained in this block)
    z_set = jnp.max(z, axis=pool_axis, keepdims=True)           # (A0,1,C) or (1,A1,C)

    alpha = alpha_ref[0]                                        # scalar PReLU slope

    # --- normalizer (folded BN) + activator (PReLU), fused ---
    # BN+PReLU is applied to the pooled row once; the *result* is broadcast.
    y1 = z * s1_ref[...] + b1_ref[...]
    y1 = jnp.where(y1 > 0, y1, alpha * y1).astype(o_ref.dtype)
    y2 = z_set * s2_ref[...] + b2_ref[...]
    y2 = jnp.where(y2 > 0, y2, alpha * y2).astype(o_ref.dtype)

    # Lane-dense (2*C_mid channels) store in the output dtype.
    o_ref[0] = jnp.concatenate(
        [y1, jnp.broadcast_to(y2, (a0, a1, c_mid))], axis=-1)


def _vmem_capacity_bytes():
    try:
        return int(pltpu.get_tpu_info().vmem_capacity_bytes)
    except Exception:
        return 64 * 1024 * 1024   # smallest current generation (v7x per-TC)


def _pick_tile(free_len, pool_len, c_in, c_mid, in_isz, out_isz,
               target_rows, budget_bytes, sublane_multiple=1):
    """Pick the smallest divisor tile of `free_len` reaching `target_rows` matmul
    rows whose estimated VMEM footprint (double-buffered blocks + in-kernel
    temporaries) fits `budget_bytes`; otherwise the largest fitting tile."""
    c_out = 2 * c_mid
    cands = [t for t in range(1, free_len + 1)
             if free_len % t == 0 and (t == free_len or t % sublane_multiple == 0)]

    def vmem_bytes(t):
        rows = t * pool_len
        blocks = 2 * rows * (c_in * in_isz + c_out * out_isz)   # double-buffered x + out
        temps = rows * (c_in * 2            # bf16 copy of the x slab
                        + c_mid * 4 * 2     # z (f32) + y1 (f32)
                        + c_out * out_isz)  # concatenated output value
        return blocks + temps

    fitting = [t for t in cands if vmem_bytes(t) <= budget_bytes]
    if not fitting:
        fitting = [cands[0]]
    reaching = [t for t in fitting if t * pool_len >= target_rows]
    tile = reaching[0] if reaching else fitting[-1]
    return tile, vmem_bytes(tile)


def unit_forward(x, params, dim_target=2, out_dtype=jnp.bfloat16):
    """Unit(order='ena') forward.  x: (B, N, M, C_in), channels-last.

    dim_target=2 pools over M, dim_target=1 pools over N (no HBM transpose).
    Output defaults to bfloat16 (the store side dominates HBM traffic)."""
    assert dim_target in (1, 2), "dim_target must be 1 (N axis) or 2 (M axis)"
    w, gamma, beta, run_mean, run_var, alpha = params
    B, N, M, C_in = x.shape
    C_mid = w.shape[1]
    C_out = 2 * C_mid

    # Fold eval-mode BatchNorm into scale/bias, pre-split into the z / pooled halves.
    scale = (gamma.astype(jnp.float32)
             * jax.lax.rsqrt(run_var.astype(jnp.float32) + EPS)).reshape(1, C_out)
    bias = (beta.astype(jnp.float32).reshape(1, C_out)
            - run_mean.astype(jnp.float32).reshape(1, C_out) * scale)
    s1, s2 = scale[:, :C_mid], scale[:, C_mid:]
    b1, b2 = bias[:, :C_mid], bias[:, C_mid:]
    # TODO(synk): only the shared-slope PReLU (num_parameters=1, the PyTorch default)
    # is supported; a per-channel slope would need a (1, C_out) VMEM operand.
    alpha_s = jnp.asarray(alpha, jnp.float32).reshape(-1)[:1]     # (1,) scalar slope

    # Weights are tiny: cast once. x stays f32 in HBM; bf16 cast happens in-kernel.
    w_bf = w.astype(jnp.bfloat16)
    in_isz = jnp.dtype(x.dtype).itemsize
    out_isz = jnp.dtype(out_dtype).itemsize

    cap = _vmem_capacity_bytes()
    budget = min(cap // 3, 40 * 1024 * 1024)
    target_rows = 8192

    if dim_target == 2:
        # pool over M; tile the N axis; block carries (TN, M) rows
        tile, est = _pick_tile(N, M, C_in, C_mid, in_isz, out_isz,
                               target_rows, budget)
        grid = (B, N // tile)
        x_spec = pl.BlockSpec((1, tile, M, C_in), lambda b, t: (b, t, 0, 0))
        o_spec = pl.BlockSpec((1, tile, M, C_out), lambda b, t: (b, t, 0, 0))
        pool_axis = 1
    else:
        # pool over N; tile the M axis; block carries (N, TM) rows.
        # The tile sits in the second-to-last block dim -> multiple of 16 (or full M)
        # keeps both the f32 input and bf16 output blocks layout-friendly.
        tile, est = _pick_tile(M, N, C_in, C_mid, in_isz, out_isz,
                               target_rows, budget, sublane_multiple=16)
        grid = (B, M // tile)
        x_spec = pl.BlockSpec((1, N, tile, C_in), lambda b, t: (b, 0, t, 0))
        o_spec = pl.BlockSpec((1, N, tile, C_out), lambda b, t: (b, 0, t, 0))
        pool_axis = 0

    vmem_limit = int(min(max(est + (4 << 20), 16 << 20), cap - (8 << 20)))

    kernel = functools.partial(_unit_ena_kernel, pool_axis=pool_axis, c_mid=C_mid)

    rows_total = B * N * M
    cost = pl.CostEstimate(
        flops=2 * rows_total * C_in * C_mid + 6 * rows_total * C_out,
        transcendentals=0,
        bytes_accessed=(rows_total * C_in * in_isz
                        + rows_total * C_out * out_isz
                        + C_in * C_mid * 2 + 4 * C_mid * 4 + 4),
    )

    return pl.pallas_call(
        kernel,
        out_shape=jax.ShapeDtypeStruct((B, N, M, C_out), out_dtype),
        grid_spec=pltpu.PrefetchScalarGridSpec(
            num_scalar_prefetch=0,
            grid=grid,
            in_specs=[
                x_spec,
                pl.BlockSpec((C_in, C_mid), lambda b, t: (0, 0)),
                pl.BlockSpec((1, C_mid), lambda b, t: (0, 0)),
                pl.BlockSpec((1, C_mid), lambda b, t: (0, 0)),
                pl.BlockSpec((1, C_mid), lambda b, t: (0, 0)),
                pl.BlockSpec((1, C_mid), lambda b, t: (0, 0)),
                pl.BlockSpec(memory_space=pltpu.MemorySpace.SMEM),
            ],
            out_specs=o_spec,
        ),
        compiler_params=pltpu.CompilerParams(
            dimension_semantics=("parallel", "parallel"),
            vmem_limit_bytes=vmem_limit),
        cost_estimate=cost,
    )(x, w_bf, s1, b1, s2, b2, alpha_s)


def unit_forward_ref(x, params, dim_target=2):
    """Pure-JAX reference (same bf16 matmul-input precision as the kernel, f32 math)."""
    w, gamma, beta, run_mean, run_var, alpha = params
    z = jnp.einsum('bnmc,cd->bnmd',
                   x.astype(jnp.bfloat16), w.astype(jnp.bfloat16),
                   preferred_element_type=jnp.float32)
    z_set = jnp.max(z, axis=dim_target, keepdims=True)
    z_cat = jnp.concatenate([z, jnp.broadcast_to(z_set, z.shape)], axis=-1)
    y = (z_cat - run_mean) * jax.lax.rsqrt(run_var + EPS) * gamma + beta
    a = jnp.asarray(alpha, jnp.float32).reshape(-1)[0]
    return jnp.where(y > 0, y, a * y)


def make_params(key, c_in, c_mid):
    c_out = 2 * c_mid
    k_w, k_m, k_g, k_b = jax.random.split(key, 4)
    w = jax.random.normal(k_w, (c_in, c_mid), jnp.float32) * (1.0 / c_in ** 0.5)
    gamma = 1.0 + 0.1 * jax.random.normal(k_g, (1, c_out), jnp.float32)
    beta = 0.1 * jax.random.normal(k_b, (1, c_out), jnp.float32)
    run_mean = 0.1 * jax.random.normal(k_m, (1, c_out), jnp.float32)
    run_var = jnp.ones((1, c_out), jnp.float32)
    alpha = jnp.full((1, 1), 0.25, jnp.float32)   # PReLU default init
    return (w, gamma, beta, run_mean, run_var, alpha)


# TODO(synk): only the 'ena' order with eval-mode BatchNormXXC is implemented; the
# other Unit orders ('nae', 'ean', 'ane') and training-mode BN stats are not.

if __name__ == "__main__":
    key = jax.random.PRNGKey(0)
    k_x, k_p = jax.random.split(key)

    B, N, M, C_in, C_mid = 2, 8, 16, 32, 64
    x = jax.random.normal(k_x, (B, N, M, C_in), jnp.float32)
    params = make_params(k_p, C_in, C_mid)

    # dim_target = 2 (pool over M), default bf16 output
    out = jax.block_until_ready(unit_forward(x, params, dim_target=2))
    ref = unit_forward_ref(x, params, dim_target=2)
    assert out.shape == (B, N, M, 2 * C_mid), out.shape
    assert out.dtype == jnp.bfloat16, out.dtype
    assert jnp.allclose(out.astype(jnp.float32), ref, atol=3e-2, rtol=3e-2), \
        "mismatch (dim_target=2, bf16 out)"

    # dim_target = 1 (pool over N), f32 output path also exercised
    out1 = jax.block_until_ready(
        unit_forward(x, params, dim_target=1, out_dtype=jnp.float32))
    ref1 = unit_forward_ref(x, params, dim_target=1)
    assert out1.dtype == jnp.float32
    assert jnp.allclose(out1, ref1, atol=2e-2, rtol=2e-2), "mismatch (dim_target=1)"

    print("KERNEL_OK")
</pallas_src>

<mosaic_0001>
module attributes {stable_mosaic.version = 11 : i64} {
  func.func @_unit_ena_kernel(%arg0: i32, %arg1: i32, %arg2: memref<1x8x16x32xf32, #tpu.memory_space<vmem>>, %arg3: memref<32x64xbf16, #tpu.memory_space<vmem>>, %arg4: memref<1x64xf32, #tpu.memory_space<vmem>>, %arg5: memref<1x64xf32, #tpu.memory_space<vmem>>, %arg6: memref<1x64xf32, #tpu.memory_space<vmem>>, %arg7: memref<1x64xf32, #tpu.memory_space<vmem>>, %arg8: memref<1xf32, #tpu.memory_space<smem>>, %arg9: memref<1x8x16x128xbf16, #tpu.memory_space<vmem>>) attributes {dimension_semantics = [#tpu.dimension_semantics<parallel>, #tpu.dimension_semantics<parallel>], iteration_bounds = array<i64: 2, 1>, scalar_prefetch = 0 : i64, scratch_operands = 0 : i64, tpu.core_type = #tpu.core_type<tc>, window_params = [{transform_indices = @transform_0, window_bounds = array<i64: 1, 8, 16, 32>}, {pipeline_mode = #tpu.pipeline_mode<synchronous>, transform_indices = @transform_1, window_bounds = array<i64: 32, 64>}, {pipeline_mode = #tpu.pipeline_mode<synchronous>, transform_indices = @transform_2, window_bounds = array<i64: 1, 64>}, {pipeline_mode = #tpu.pipeline_mode<synchronous>, transform_indices = @transform_3, window_bounds = array<i64: 1, 64>}, {pipeline_mode = #tpu.pipeline_mode<synchronous>, transform_indices = @transform_4, window_bounds = array<i64: 1, 64>}, {pipeline_mode = #tpu.pipeline_mode<synchronous>, transform_indices = @transform_5, window_bounds = array<i64: 1, 64>}, {transform_indices = @transform_6, window_bounds = array<i64: 1>}, {transform_indices = @transform_7, window_bounds = array<i64: 1, 8, 16, 128>}]} {
    %c0 = arith.constant 0 : index
    %c0_0 = arith.constant 0 : index
    %c0_1 = arith.constant 0 : index
    %c0_2 = arith.constant 0 : index
    %0 = vector.load %arg2[%c0, %c0_0, %c0_1, %c0_2] : memref<1x8x16x32xf32, #tpu.memory_space<vmem>>, vector<1x8x16x32xf32>
    %1 = vector.shape_cast %0 : vector<1x8x16x32xf32> to vector<8x16x32xf32>
    %2 = vector.shape_cast %1 : vector<8x16x32xf32> to vector<128x32xf32>
    %3 = arith.truncf %2 : vector<128x32xf32> to vector<128x32xbf16>
    %c0_3 = arith.constant 0 : index
    %c0_4 = arith.constant 0 : index
    %4 = vector.load %arg3[%c0_3, %c0_4] : memref<32x64xbf16, #tpu.memory_space<vmem>>, vector<32x64xbf16>
    %cst = arith.constant dense<0.000000e+00> : vector<128x64xf32>
    %5 = tpu.matmul %3, %4, %cst {dimension_numbers = #tpu.dot_dimension_numbers<[1], [0], [0], [1], [0, 0, 1, 1], [], []>} : vector<128x32xbf16>, vector<32x64xbf16>, vector<128x64xf32> -> vector<128x64xf32>
    %6 = vector.shape_cast %5 : vector<128x64xf32> to vector<8x16x64xf32>
    %cst_5 = arith.constant dense<0xFF800000> : vector<8x64xf32>
    %7 = vector.multi_reduction <maximumf>, %6, %cst_5 [1] : vector<8x16x64xf32> to vector<8x64xf32>
    %8 = vector.shape_cast %7 : vector<8x64xf32> to vector<8x1x64xf32>
    %c0_6 = arith.constant 0 : index
    %9 = memref.load %arg8[%c0_6] : memref<1xf32, #tpu.memory_space<smem>>
    %c0_7 = arith.constant 0 : index
    %c0_8 = arith.constant 0 : index
    %10 = vector.load %arg4[%c0_7, %c0_8] : memref<1x64xf32, #tpu.memory_space<vmem>>, vector<1x64xf32>
    %11 = vector.shape_cast %10 : vector<1x64xf32> to vector<1x1x64xf32>
    %12 = vector.broadcast %11 : vector<1x1x64xf32> to vector<8x16x64xf32>
    %13 = arith.mulf %6, %12 : vector<8x16x64xf32>
    %c0_9 = arith.constant 0 : index
    %c0_10 = arith.constant 0 : index
    %14 = vector.load %arg5[%c0_9, %c0_10] : memref<1x64xf32, #tpu.memory_space<vmem>>, vector<1x64xf32>
    %15 = vector.shape_cast %14 : vector<1x64xf32> to vector<1x1x64xf32>
    %16 = vector.broadcast %15 : vector<1x1x64xf32> to vector<8x16x64xf32>
    %17 = arith.addf %13, %16 : vector<8x16x64xf32>
    %cst_11 = arith.constant 0.000000e+00 : f32
    %18 = vector.broadcast %cst_11 : f32 to vector<8x16x64xf32>
    %19 = arith.cmpf ogt, %17, %18 : vector<8x16x64xf32>
    %20 = vector.broadcast %9 : f32 to vector<8x16x64xf32>
    %21 = arith.mulf %20, %17 : vector<8x16x64xf32>
    %22 = arith.select %19, %17, %21 : vector<8x16x64xi1>, vector<8x16x64xf32>
    %23 = arith.truncf %22 : vector<8x16x64xf32> to vector<8x16x64xbf16>
    %c0_12 = arith.constant 0 : index
    %c0_13 = arith.constant 0 : index
    %24 = vector.load %arg6[%c0_12, %c0_13] : memref<1x64xf32, #tpu.memory_space<vmem>>, vector<1x64xf32>
    %25 = vector.shape_cast %24 : vector<1x64xf32> to vector<1x1x64xf32>
    %26 = vector.broadcast %25 : vector<1x1x64xf32> to vector<8x1x64xf32>
    %27 = arith.mulf %8, %26 : vector<8x1x64xf32>
    %c0_14 = arith.constant 0 : index
    %c0_15 = arith.constant 0 : index
    %28 = vector.load %arg7[%c0_14, %c0_15] : memref<1x64xf32, #tpu.memory_space<vmem>>, vector<1x64xf32>
    %29 = vector.shape_cast %28 : vector<1x64xf32> to vector<1x1x64xf32>
    %30 = vector.broadcast %29 : vector<1x1x64xf32> to vector<8x1x64xf32>
    %31 = arith.addf %27, %30 : vector<8x1x64xf32>
    %cst_16 = arith.constant 0.000000e+00 : f32
    %32 = vector.broadcast %cst_16 : f32 to vector<8x1x64xf32>
    %33 = arith.cmpf ogt, %31, %32 : vector<8x1x64xf32>
    %34 = vector.broadcast %9 : f32 to vector<8x1x64xf32>
    %35 = arith.mulf %34, %31 : vector<8x1x64xf32>
    %36 = arith.select %33, %31, %35 : vector<8x1x64xi1>, vector<8x1x64xf32>
    %37 = arith.truncf %36 : vector<8x1x64xf32> to vector<8x1x64xbf16>
    %38 = vector.shape_cast %37 : vector<8x1x64xbf16> to vector<8x1x64xbf16>
    %39 = vector.broadcast %38 : vector<8x1x64xbf16> to vector<8x16x64xbf16>
    %40 = tpu.concatenate %23, %39 in 2 : vector<8x16x64xbf16>, vector<8x16x64xbf16> -> vector<8x16x128xbf16>
    %c0_17 = arith.constant 0 : index
    %c0_18 = arith.constant 0 : index
    %c0_19 = arith.constant 0 : index
    %c0_20 = arith.constant 0 : index
    %41 = vector.load %arg9[%c0_17, %c0_18, %c0_19, %c0_20] : memref<1x8x16x128xbf16, #tpu.memory_space<vmem>>, vector<1x8x16x128xbf16>
    %42 = vector.shape_cast %41 : vector<1x8x16x128xbf16> to vector<8x16x128xbf16>
    %43 = vector.shape_cast %40 : vector<8x16x128xbf16> to vector<1x8x16x128xbf16>
    tpu.vector_store %arg9[%c0_17, %c0_18, %c0_19, %c0_20], %43 {strides = array<i32>} : memref<1x8x16x128xbf16, #tpu.memory_space<vmem>>, vector<1x8x16x128xbf16>,
    return
  }
  func.func @transform_0(%arg0: i32, %arg1: i32) -> (i32, i32, i32, i32) {
    %c0_i32 = arith.constant 0 : i32
    %c0_i32_0 = arith.constant 0 : i32
    %c0_i32_1 = arith.constant 0 : i32
    return %arg0, %arg1, %c0_i32, %c0_i32_0 : i32, i32, i32, i32
  }
  func.func @transform_1(%arg0: i32, %arg1: i32) -> (i32, i32) {
    %c0_i32 = arith.constant 0 : i32
    %c0_i32_0 = arith.constant 0 : i32
    %c0_i32_1 = arith.constant 0 : i32
    return %c0_i32, %c0_i32_0 : i32, i32
  }
  func.func @transform_2(%arg0: i32, %arg1: i32) -> (i32, i32) {
    %c0_i32 = arith.constant 0 : i32
    %c0_i32_0 = arith.constant 0 : i32
    %c0_i32_1 = arith.constant 0 : i32
    return %c0_i32, %c0_i32_0 : i32, i32
  }
  func.func @transform_3(%arg0: i32, %arg1: i32) -> (i32, i32) {
    %c0_i32 = arith.constant 0 : i32
    %c0_i32_0 = arith.constant 0 : i32
    %c0_i32_1 = arith.constant 0 : i32
    return %c0_i32, %c0_i32_0 : i32, i32
  }
  func.func @transform_4(%arg0: i32, %arg1: i32) -> (i32, i32) {
    %c0_i32 = arith.constant 0 : i32
    %c0_i32_0 = arith.constant 0 : i32
    %c0_i32_1 = arith.constant 0 : i32
    return %c0_i32, %c0_i32_0 : i32, i32
  }
  func.func @transform_5(%arg0: i32, %arg1: i32) -> (i32, i32) {
    %c0_i32 = arith.constant 0 : i32
    %c0_i32_0 = arith.constant 0 : i32
    %c0_i32_1 = arith.constant 0 : i32
    return %c0_i32, %c0_i32_0 : i32, i32
  }
  func.func @transform_6(%arg0: i32, %arg1: i32) -> i32 {
    %c0_i32 = arith.constant 0 : i32
    %c0_i32_0 = arith.constant 0 : i32
    return %c0_i32 : i32
  }
  func.func @transform_7(%arg0: i32, %arg1: i32) -> (i32, i32, i32, i32) {
    %c0_i32 = arith.constant 0 : i32
    %c0_i32_0 = arith.constant 0 : i32
    %c0_i32_1 = arith.constant 0 : i32
    return %arg0, %arg1, %c0_i32, %c0_i32_0 : i32, i32, i32, i32
  }
}

</mosaic_0001>

<llo_original>
// kernel: tpu_custom_call.1
$region0: #{tpu_custom_call.1}
  #allocation0 [shape = 'u32[]', space=smem, size = 0x4, offset = 0x4, fixed_abs, tag = 'smem constant byte address 0x4 - core index']
  #allocation1 [shape = 'u32[144,128]{1,0:T(1,128)}', space=vmem, size = 0x12000, scoped, tag = 'internal scratch']
  #allocation2 [shape = 'f32[1]{0:T(128)S(6)}', space=smem, size = 0x200, scoped, tag = 'scoped memory for tpu_custom_call.1']
  %s0 = inlined_call_operand.hbm [shape: f32[2,8,16,32], index: 0, kind: input, shape index: {}]
  %s1 = inlined_call_operand.hbm [shape: bf16[32,64], index: 1, kind: input, shape index: {}]
  %s2 = inlined_call_operand.vmem [shape: f32[1,64], index: 2, kind: input, shape index: {}]
  %s3 = inlined_call_operand.vmem [shape: f32[1,64], index: 3, kind: input, shape index: {}]
  %s4 = inlined_call_operand.vmem [shape: f32[1,64], index: 4, kind: input, shape index: {}]
  %s5 = inlined_call_operand.vmem [shape: f32[1,64], index: 5, kind: input, shape index: {}]
  %s6 = inlined_call_operand.<no memory space> [shape: f32[1], index: 6, kind: input, shape index: {}]
  %s7 = inlined_call_operand.hbm [shape: bf16[2,8,16,128], index: 7, kind: output, shape index: {}]
  %s8 = sld [smem:[#allocation0]]
  $region69: #{tpu_custom_call.1} parent=0
    _
  %s10 = ssub.s32 1, %s8
  %s11 = scalar_select 0, %s10, %s8
  %12 = sst [smem:[#allocation2]] %s6
  $region1: #{tpu_custom_call.1} parent=0
    #allocation3 [shape = 'u8[131072]{0}', space=vmem, size = 0x20000, scoped, tag = 'input window, operand 0']
    #allocation4 [shape = 's32[2]{0}', space=sflag, size = 0x8, scoped, tag = 'scoped memory for tpu_custom_call.1']
    #allocation5 [shape = 's32[2]{0}', space=sflag, size = 0x8, scoped, tag = 'scoped memory for tpu_custom_call.1']
    #allocation6 [shape = 'u8[8192]{0}', space=vmem, size = 0x2000, scoped, tag = 'input window, operand 1, single buffered']
    #allocation7 [shape = 's32[1]{0}', space=sflag, size = 0x4, scoped, tag = 'scoped memory for tpu_custom_call.1']
    #allocation8 [shape = 'u8[65536]{0}', space=vmem, size = 0x10000, scoped, tag = 'output window, operand 0']
    %13 = vsyncpa [#allocation4], 0
    %s14 = scalar_lea.sflag [#allocation4], 1
    %15 = vsyncpa %s14, 0
    %16 = vsyncpa [#allocation7], 0
    %17 = vsyncpa [#allocation5], 0
    %s18 = scalar_lea.sflag [#allocation5], 1
    %19 = vsyncpa %s18, 0
    loop: start=0, step=1, limit=4
    $region2: #{tpu_custom_call.1} parent=1 // loop_pre_header
      _
    $region3: #{tpu_custom_call.1} parent=1 // loop_header
      %s21 = sphi 0, %s25
      %p22 = scmp.ge.s32.totalorder %s21, 4
      %s28 = sphi 0, %s40
      %s29 = sphi 0, %s36
      %s30 = sphi 0, %s28
      %s31 = sphi 0, %s29
      %s32 = sphi 0, %s30
      %s33 = sphi 0, %s31
      %s45 = sphi 0, %s47
      %s48 = sphi 0, %s45
      %s49 = sphi 0, %s48
      %s65 = sphi 0, %s49
      %s69 = sphi 0, %s69
      %s71 = sphi 0, %s69
      %s72 = sphi 0, %s71
      %s86 = sphi 0, %s72
      %s90 = sphi 0, %s90
      %s92 = sphi 0, %s90
      %s93 = sphi 0, %s92
      %s107 = sphi 0, %s93
      %s111 = sphi 0, %s111
      %s113 = sphi 0, %s111
      %s114 = sphi 0, %s113
      %s128 = sphi 0, %s114
      %s132 = sphi 0, %s132
      %s134 = sphi 0, %s132
      %s135 = sphi 0, %s134
      %s149 = sphi 0, %s135
      %s153 = sphi 0, %s153
      %s155 = sphi 0, %s153
      %s156 = sphi 0, %s155
      %s170 = sphi 0, %s156
      %s174 = sphi 0, %s174
      %s176 = sphi 0, %s174
      %s177 = sphi 0, %s176
      %s191 = sphi 0, %s177
      %s199 = sphi 0, %s201
      %s202 = sphi 0, %s199
      %s203 = sphi 0, %s202
      %s219 = sphi 0, %s203
    $region4: #{tpu_custom_call.1} parent=1 // loop_header_branch
      %24 = sbr.rel (%p22) target = $region8
    $region5: #{tpu_custom_call.1} parent=1 // loop_body
      %s26 = ssub.s32 %s21, 1
      %s27 = ssub.s32 %s21, 2
      %s34 = sadd.s32 1, %s29
      %p35 = scmp.ge.s32.totalorder %s34, 1
      %s36 = scalar_select %p35, 0, %s34
      %s37 = sadd.s32 1, %s28
      %s38 = scalar_select %p35, %s37, %s28
      %p39 = scmp.ge.s32.totalorder %s38, 2
      %s40 = scalar_select %p39, 0, %s38
      %s41 = ssub.s32 %s28, %s40
      %s42 = ssub.s32 %s29, %s36
      %s43 = sor.u32 %s41, %s42
      %p44 = scmp.eq.s32.totalorder %s43, 0
      %s46 = sadd.s32 %s45, 1
      %s47 = scalar_select %p44, %s45, %s46
      %p50 = pneg %p44
      %p51 = scmp.eq.s32.totalorder %s21, 1
      %p52 = por %p50, %p51
      %p53 = scmp.ne.s32.totalorder %s45, %s48
      %p54 = scmp.eq.s32.totalorder %s21, 0
      %p55 = por %p53, %p54
      %p56 = scmp.ne.s32.totalorder %s45, %s48
      %p57 = scmp.eq.s32.totalorder %s26, 1
      %p58 = por %p56, %p57
      %p59 = scmp.ne.s32.totalorder %s48, %s49
      %p60 = scmp.eq.s32.totalorder %s26, 0
      %p61 = por %p59, %p60
      %p62 = scmp.ne.s32.totalorder %s48, %s49
      %p63 = scmp.eq.s32.totalorder %s27, 1
      %p64 = por %p62, %p63
      %p66 = scmp.ne.s32.totalorder %s49, %s65
      %p67 = scmp.eq.s32.totalorder %s27, 0
      %p68 = por %p66, %p67
      %s70 = sadd.s32 %s69, 1
      %p73 = scmp.eq.s32.totalorder %s21, 1
      %p74 = scmp.ne.s32.totalorder %s69, %s71
      %p75 = scmp.eq.s32.totalorder %s21, 0
      %p76 = por %p74, %p75
      %p77 = scmp.ne.s32.totalorder %s69, %s71
      %p78 = scmp.eq.s32.totalorder %s26, 1
      %p79 = por %p77, %p78
      %p80 = scmp.ne.s32.totalorder %s71, %s72
      %p81 = scmp.eq.s32.totalorder %s26, 0
      %p82 = por %p80, %p81
      %p83 = scmp.ne.s32.totalorder %s71, %s72
      %p84 = scmp.eq.s32.totalorder %s27, 1
      %p85 = por %p83, %p84
      %p87 = scmp.ne.s32.totalorder %s72, %s86
      %p88 = scmp.eq.s32.totalorder %s27, 0
      %p89 = por %p87, %p88
      %s91 = sadd.s32 %s90, 1
      %p94 = scmp.eq.s32.totalorder %s21, 1
      %p95 = scmp.ne.s32.totalorder %s90, %s92
      %p96 = scmp.eq.s32.totalorder %s21, 0
      %p97 = por %p95, %p96
      %p98 = scmp.ne.s32.totalorder %s90, %s92
      %p99 = scmp.eq.s32.totalorder %s26, 1
      %p100 = por %p98, %p99
      %p101 = scmp.ne.s32.totalorder %s92, %s93
      %p102 = scmp.eq.s32.totalorder %s26, 0
      %p103 = por %p101, %p102
      %p104 = scmp.ne.s32.totalorder %s92, %s93
      %p105 = scmp.eq.s32.totalorder %s27, 1
      %p106 = por %p104, %p105
      %p108 = scmp.ne.s32.totalorder %s93, %s107
      %p109 = scmp.eq.s32.totalorder %s27, 0
      %p110 = por %p108, %p109
      %s112 = sadd.s32 %s111, 1
      %p115 = scmp.eq.s32.totalorder %s21, 1
      %p116 = scmp.ne.s32.totalorder %s111, %s113
      %p117 = scmp.eq.s32.totalorder %s21, 0
      %p118 = por %p116, %p117
      %p119 = scmp.ne.s32.totalorder %s111, %s113
      %p120 = scmp.eq.s32.totalorder %s26, 1
      %p121 = por %p119, %p120
      %p122 = scmp.ne.s32.totalorder %s113, %s114
      %p123 = scmp.eq.s32.totalorder %s26, 0
      %p124 = por %p122, %p123
      %p125 = scmp.ne.s32.totalorder %s113, %s114
      %p126 = scmp.eq.s32.totalorder %s27, 1
      %p127 = por %p125, %p126
      %p129 = scmp.ne.s32.totalorder %s114, %s128
      %p130 = scmp.eq.s32.totalorder %s27, 0
      %p131 = por %p129, %p130
      %s133 = sadd.s32 %s132, 1
      %p136 = scmp.eq.s32.totalorder %s21, 1
      %p137 = scmp.ne.s32.totalorder %s132, %s134
      %p138 = scmp.eq.s32.totalorder %s21, 0
      %p139 = por %p137, %p138
      %p140 = scmp.ne.s32.totalorder %s132, %s134
      %p141 = scmp.eq.s32.totalorder %s26, 1
      %p142 = por %p140, %p141
      %p143 = scmp.ne.s32.totalorder %s134, %s135
      %p144 = scmp.eq.s32.totalorder %s26, 0
      %p145 = por %p143, %p144
      %p146 = scmp.ne.s32.totalorder %s134, %s135
      %p147 = scmp.eq.s32.totalorder %s27, 1
      %p148 = por %p146, %p147
      %p150 = scmp.ne.s32.totalorder %s135, %s149
      %p151 = scmp.eq.s32.totalorder %s27, 0
      %p152 = por %p150, %p151
      %s154 = sadd.s32 %s153, 1
      %p157 = scmp.eq.s32.totalorder %s21, 1
      %p158 = scmp.ne.s32.totalorder %s153, %s155
      %p159 = scmp.eq.s32.totalorder %s21, 0
      %p160 = por %p158, %p159
      %p161 = scmp.ne.s32.totalorder %s153, %s155
      %p162 = scmp.eq.s32.totalorder %s26, 1
      %p163 = por %p161, %p162
      %p164 = scmp.ne.s32.totalorder %s155, %s156
      %p165 = scmp.eq.s32.totalorder %s26, 0
      %p166 = por %p164, %p165
      %p167 = scmp.ne.s32.totalorder %s155, %s156
      %p168 = scmp.eq.s32.totalorder %s27, 1
      %p169 = por %p167, %p168
      %p171 = scmp.ne.s32.totalorder %s156, %s170
      %p172 = scmp.eq.s32.totalorder %s27, 0
      %p173 = por %p171, %p172
      %s175 = sadd.s32 %s174, 1
      %p178 = scmp.eq.s32.totalorder %s21, 1
      %p179 = scmp.ne.s32.totalorder %s174, %s176
      %p180 = scmp.eq.s32.totalorder %s21, 0
      %p181 = por %p179, %p180
      %p182 = scmp.ne.s32.totalorder %s174, %s176
      %p183 = scmp.eq.s32.totalorder %s26, 1
      %p184 = por %p182, %p183
      %p185 = scmp.ne.s32.totalorder %s176, %s177
      %p186 = scmp.eq.s32.totalorder %s26, 0
      %p187 = por %p185, %p186
      %p188 = scmp.ne.s32.totalorder %s176, %s177
      %p189 = scmp.eq.s32.totalorder %s27, 1
      %p190 = por %p188, %p189
      %p192 = scmp.ne.s32.totalorder %s177, %s191
      %p193 = scmp.eq.s32.totalorder %s27, 0
      %p194 = por %p192, %p193
      %s195 = ssub.s32 %s28, %s40
      %s196 = ssub.s32 %s29, %s36
      %s197 = sor.u32 %s195, %s196
      %p198 = scmp.eq.s32.totalorder %s197, 0
      %s200 = sadd.s32 %s199, 1
      %s201 = scalar_select %p198, %s199, %s200
      %p204 = pneg %p198
      %p205 = scmp.eq.s32.totalorder %s21, 1
      %p206 = por %p204, %p205
      %p207 = scmp.ne.s32.totalorder %s199, %s202
      %p208 = scmp.eq.s32.totalorder %s21, 0
      %p209 = por %p207, %p208
      %p210 = scmp.ne.s32.totalorder %s199, %s202
      %p211 = scmp.eq.s32.totalorder %s26, 1
      %p212 = por %p210, %p211
      %p213 = scmp.ne.s32.totalorder %s202, %s203
      %p214 = scmp.eq.s32.totalorder %s26, 0
      %p215 = por %p213, %p214
      %p216 = scmp.ne.s32.totalorder %s202, %s203
      %p217 = scmp.eq.s32.totalorder %s27, 1
      %p218 = por %p216, %p217
      %p220 = scmp.ne.s32.totalorder %s203, %s219
      %p221 = scmp.eq.s32.totalorder %s27, 0
      %p222 = por %p220, %p221
      %p223 = scmp.le.s32.totalorder 1, %s21
      %p224 = scmp.lt.s32.totalorder %s21, 3
      %p225 = pnand %p223, %p224
      %p226 = pneg %p225
      // Predicated region
      $region9: #{tpu_custom_call.1} parent=5 // pred_check
        _
      $region10: #{tpu_custom_call.1} parent=5 // pred_check_branch
        %228 = sbr.rel (%p225) target = $region12
      $region11: #{tpu_custom_call.1} parent=5 // pred_region
        %s229 = ssub.s32 %s21, 1
        // Predicated region
        $region13: #{tpu_custom_call.1} parent=11 // pred_check
          %p230 = pneg %p82
        $region14: #{tpu_custom_call.1} parent=11 // pred_check_branch
          %232 = sbr.rel (%p230) target = $region16
        $region15: #{tpu_custom_call.1} parent=11 // pred_region
          %s234 = ssub.s32 256, 256
          %235 = vsyncadd [#allocation7], %s234
          %s236 = sshll.u32 [#allocation6], 4
          %s237 = int_to_ptr.vmem [resolvable:$true] %s236
          %242 = dma.hbm_to_vmem [thread:$0]  %s1, 256, %s237, [#allocation7], 64, 64, 4
        $region16: #{tpu_custom_call.1} parent=11 // pred_fallthru
          _
        // Predicated region
        $region17: #{tpu_custom_call.1} parent=11 // pred_check
          %p243 = pneg %p103
        $region18: #{tpu_custom_call.1} parent=11 // pred_check_branch
          %245 = sbr.rel (%p243) target = $region20
        $region19: #{tpu_custom_call.1} parent=11 // pred_region
          _
        $region20: #{tpu_custom_call.1} parent=11 // pred_fallthru
          _
        // Predicated region
        $region21: #{tpu_custom_call.1} parent=11 // pred_check
          %p246 = pneg %p124
        $region22: #{tpu_custom_call.1} parent=11 // pred_check_branch
          %248 = sbr.rel (%p246) target = $region24
        $region23: #{tpu_custom_call.1} parent=11 // pred_region
          _
        $region24: #{tpu_custom_call.1} parent=11 // pred_fallthru
          _
        // Predicated region
        $region25: #{tpu_custom_call.1} parent=11 // pred_check
          %p249 = pneg %p145
        $region26: #{tpu_custom_call.1} parent=11 // pred_check_branch
          %251 = sbr.rel (%p249) target = $region28
        $region27: #{tpu_custom_call.1} parent=11 // pred_region
          _
        $region28: #{tpu_custom_call.1} parent=11 // pred_fallthru
          _
        // Predicated region
        $region29: #{tpu_custom_call.1} parent=11 // pred_check
          %p252 = pneg %p166
        $region30: #{tpu_custom_call.1} parent=11 // pred_check_branch
          %254 = sbr.rel (%p252) target = $region32
        $region31: #{tpu_custom_call.1} parent=11 // pred_region
          _
        $region32: #{tpu_custom_call.1} parent=11 // pred_fallthru
          _
        // Predicated region
        $region33: #{tpu_custom_call.1} parent=11 // pred_check
          %p255 = pneg %p187
        $region34: #{tpu_custom_call.1} parent=11 // pred_check_branch
          %257 = sbr.rel (%p255) target = $region36
        $region35: #{tpu_custom_call.1} parent=11 // pred_region
          _
        $region36: #{tpu_custom_call.1} parent=11 // pred_fallthru
          _
      $region12: #{tpu_custom_call.1} parent=5 // pred_fallthru
        _
      %p258 = scmp.lt.s32.totalorder %s21, 2
      // Predicated region
      $region37: #{tpu_custom_call.1} parent=5 // pred_check
        %p259 = pneg %p258
      $region38: #{tpu_custom_call.1} parent=5 // pred_check_branch
        %261 = sbr.rel (%p259) target = $region40
      $region39: #{tpu_custom_call.1} parent=5 // pred_region
        // Predicated region
        $region41: #{tpu_custom_call.1} parent=39 // pred_check
          %p262 = pneg %p55
        $region42: #{tpu_custom_call.1} parent=39 // pred_check_branch
          %264 = sbr.rel (%p262) target = $region44
        $region43: #{tpu_custom_call.1} parent=39 // pred_region
          %s265 = sand.u32 %s45, 1
          %s266 = scalar_lea.sflag [#allocation4], %s265
          %s267 = sand.u32 %s45, 1
          %s268 = smul.addr %s267, 128
          %s269 = scalar_lea.vmem [#allocation3], %s268
          %s270 = smul.u32 8, %s29
          %s272 = ssub.s32 2048, 2048
          %273 = vsyncadd %s266, %s272
          %s274 = smul.addr %s270, 2
          %s275 = smul.addr %s28, 16
          %s276 = sadd.s32 %s274, %s275
          %s277 = smul.addr %s276, 128
          %s278 = scalar_lea.hbm %s0, %s277
          %s279 = sshll.u32 %s269, 4
          %s280 = int_to_ptr.vmem [resolvable:$true] %s279
          %285 = dma.hbm_to_vmem [thread:$0]  %s278, 2048, %s280, %s266, 128, 128, 8
        $region44: #{tpu_custom_call.1} parent=39 // pred_fallthru
          _
      $region40: #{tpu_custom_call.1} parent=5 // pred_fallthru
        _
      %p286 = scmp.le.s32.totalorder 1, %s21
      %p287 = scmp.lt.s32.totalorder %s21, 3
      %p288 = pnand %p286, %p287
      %p289 = pneg %p288
      // Predicated region
      $region45: #{tpu_custom_call.1} parent=5 // pred_check
        _
      $region46: #{tpu_custom_call.1} parent=5 // pred_check_branch
        %291 = sbr.rel (%p288) target = $region48
      $region47: #{tpu_custom_call.1} parent=5 // pred_region
        %s292 = ssub.s32 %s21, 1
        %s293 = sand.u32 %s48, 1
        %s294 = scalar_lea.sflag [#allocation4], %s293
        %s295 = sand.u32 %s48, 1
        %s296 = smul.addr %s295, 128
        %s297 = scalar_lea.vmem [#allocation3], %s296
        // Predicated region
        $region49: #{tpu_custom_call.1} parent=47 // pred_check
          %p298 = pneg %p61
        $region50: #{tpu_custom_call.1} parent=47 // pred_check_branch
          %300 = sbr.rel (%p298) target = $region52
        $region51: #{tpu_custom_call.1} parent=47 // pred_region
          %301 = dma.done %s294, 2048
        $region52: #{tpu_custom_call.1} parent=47 // pred_fallthru
          _
        // Predicated region
        $region53: #{tpu_custom_call.1} parent=47 // pred_check
          %p302 = pneg %p82
        $region54: #{tpu_custom_call.1} parent=47 // pred_check_branch
          %304 = sbr.rel (%p302) target = $region56
        $region55: #{tpu_custom_call.1} parent=47 // pred_region
          %305 = dma.done [#allocation7], 256
        $region56: #{tpu_custom_call.1} parent=47 // pred_fallthru
          _
        %s306 = sand.u32 %s48, 1
        %s307 = scalar_lea.sflag [#allocation4], %s306
        %s308 = sand.u32 %s48, 1
        %s309 = smul.addr %s308, 128
        %s310 = scalar_lea.vmem [#allocation3], %s309
        %p311 = pneg %p61
        %p312 = pneg %p58
        %p313 = pneg %p82
        %p314 = pneg %p79
        %p315 = pneg %p103
        %p316 = pneg %p100
        %p317 = pneg %p124
        %p318 = pneg %p121
        %p319 = pneg %p145
        %p320 = pneg %p142
        %p321 = pneg %p166
        %p322 = pneg %p163
        %p323 = pneg %p187
        %p324 = pneg %p184
        %p325 = pneg %p215
        %p326 = pneg %p212
        %s327 = sand.u32 %s202, 1
        %s328 = scalar_lea.sflag [#allocation5], %s327
        %s329 = sand.u32 %s202, 1
        %s330 = smul.addr %s329, 64
        %s331 = scalar_lea.vmem [#allocation8], %s330
        %s332 = smul.u32 8, %s31
        %s333 = smul.u32 8, %s31
        %v335 = vld [vmem:[%s297] sm:$0xff]
        %v336 = vld [vmem:[%s297 + $0x8] sm:$0xff]
        %v337 = vld [vmem:[%s297 + $0x10] sm:$0xff]
        %v338 = vld [vmem:[%s297 + $0x18] sm:$0xff]
        %v339 = vld [vmem:[%s297 + $0x20] sm:$0xff]
        %v340 = vld [vmem:[%s297 + $0x28] sm:$0xff]
        %v341 = vld [vmem:[%s297 + $0x30] sm:$0xff]
        %v342 = vld [vmem:[%s297 + $0x38] sm:$0xff]
        %v343 = vld [vmem:[%s297 + $0x40] sm:$0xff]
        %v344 = vld [vmem:[%s297 + $0x48] sm:$0xff]
        %v345 = vld [vmem:[%s297 + $0x50] sm:$0xff]
        %v346 = vld [vmem:[%s297 + $0x58] sm:$0xff]
        %v347 = vld [vmem:[%s297 + $0x60] sm:$0xff]
        %v348 = vld [vmem:[%s297 + $0x68] sm:$0xff]
        %v349 = vld [vmem:[%s297 + $0x70] sm:$0xff]
        %v350 = vld [vmem:[%s297 + $0x78] sm:$0xff]
        %v351 = vpack.c.bf16 %v336, %v335
        %v352 = vpack.c.bf16 %v338, %v337
        %v353 = vpack.c.bf16 %v340, %v339
        %v354 = vpack.c.bf16 %v342, %v341
        %v355 = vpack.c.bf16 %v344, %v343
        %v356 = vpack.c.bf16 %v346, %v345
        %v357 = vpack.c.bf16 %v348, %v347
        %v358 = vpack.c.bf16 %v350, %v349
        %v359 = vld [vmem:[#allocation6] sm:$0xf]
        %v360 = vld [vmem:[#allocation6 + $0x4] sm:$0xf]
        %v361 = vld [vmem:[#allocation6 + $0x8] sm:$0xf]
        %v362 = vld [vmem:[#allocation6 + $0xc] sm:$0xf]
        %v367 = vunpack.c.l.b16 %v359
        %v368 = vunpack.c.l.b16 %v360
        %v369 = vunpack.c.l.b16 %v361
        %v370 = vunpack.c.l.b16 %v362
        %v371 = vpack.c.b16 %v368, %v367
        %v372 = vpack.c.b16 %v370, %v369
        %vm375 = vcmask 261120
        %v377 = vsel %vm375, %v351, 0
        %v380 = vsel %vm375, %v352, 0
        %v383 = vsel %vm375, %v353, 0
        %v386 = vsel %vm375, %v354, 0
        %v389 = vsel %vm375, %v355, 0
        %v392 = vsel %vm375, %v356, 0
        %v395 = vsel %vm375, %v357, 0
        %v398 = vsel %vm375, %v358, 0
        %400 = vmatprep.subr.bf16.mxu0 0
        %401 = vmatpush1.bf16.msra.mxu0 %v371
        %402 = vmatprep.subr.bf16.mxu0 0
        %403 = vmatpush1.bf16.msra.mxu0 %v372
        %404 = vmatprep.subr.bf16.mxu0 0
        %405 = vmatpush1.bf16.msra.mxu0 0
        %406 = vmatprep.subr.bf16.mxu0 0
        %407 = vmatpush1.bf16.msra.mxu0 0
        %408 = vmatprep.subr.bf16.mxu0 0
        %409 = vmatpush1.bf16.msra.mxu0 0
        %410 = vmatprep.subr.bf16.mxu0 0
        %411 = vmatpush1.bf16.msra.mxu0 0
        %412 = vmatprep.subr.bf16.mxu0 0
        %413 = vmatpush1.bf16.msra.mxu0 0
        %414 = vmatprep.subr.bf16.mxu0 0
        %415 = vmatpush1.bf16.msra.mxu0 0
        %416 = vmatprep.subr.bf16.mxu0 0
        %417 = vmatpush1.bf16.msra.mxu0 0
        %418 = vmatprep.subr.bf16.mxu0 0
        %419 = vmatpush1.bf16.msra.mxu0 0
        %420 = vmatprep.subr.bf16.mxu0 0
        %421 = vmatpush1.bf16.msra.mxu0 0
        %422 = vmatprep.subr.bf16.mxu0 0
        %423 = vmatpush1.bf16.msra.mxu0 0
        %424 = vmatprep.subr.bf16.mxu0 0
        %425 = vmatpush1.bf16.msra.mxu0 0
        %426 = vmatprep.subr.bf16.mxu0 0
        %427 = vmatpush1.bf16.msra.mxu0 0
        %428 = vmatprep.subr.bf16.mxu0 0
        %429 = vmatpush1.bf16.msra.mxu0 0
        %430 = vmatprep.subr.bf16.mxu0 0
        %431 = vmatpush1.bf16.msra.mxu0 0
        %432 = vmatprep.mubr.bf16.mxu0 0
        %433 = vmatmul.mubr.bf16.gmra.mrb[0].mxu0 %v377
        %v434 = vpop.f32.mrb[0].mxu0
        %v435 = vadd.f32 0.0, %v434
        %v436 = vpop.f32.mrb[0].mxu0
        %v437 = vpop.f32.mrb[0].mxu0
        %v438 = vadd.f32 0.0, %v437
        %v439 = vpop.f32.mrb[0].mxu0
        %440 = vmatprep.mubr.bf16.mxu0 0
        %441 = vmatmul.mubr.bf16.gmra.mrb[0].mxu0 %v380
        %v442 = vpop.f32.mrb[0].mxu0
        %v443 = vadd.f32 0.0, %v442
        %v444 = vpop.f32.mrb[0].mxu0
        %v445 = vpop.f32.mrb[0].mxu0
        %v446 = vadd.f32 0.0, %v445
        %v447 = vpop.f32.mrb[0].mxu0
        %448 = vmatprep.mubr.bf16.mxu0 0
        %449 = vmatmul.mubr.bf16.gmra.mrb[0].mxu0 %v383
        %v450 = vpop.f32.mrb[0].mxu0
        %v451 = vadd.f32 0.0, %v450
        %v452 = vpop.f32.mrb[0].mxu0
        %v453 = vpop.f32.mrb[0].mxu0
        %v454 = vadd.f32 0.0, %v453
        %v455 = vpop.f32.mrb[0].mxu0
        %456 = vmatprep.mubr.bf16.mxu0 0
        %457 = vmatmul.mubr.bf16.gmra.mrb[0].mxu0 %v386
        %v458 = vpop.f32.mrb[0].mxu0
        %v459 = vadd.f32 0.0, %v458
        %v460 = vpop.f32.mrb[0].mxu0
        %v461 = vpop.f32.mrb[0].mxu0
        %v462 = vadd.f32 0.0, %v461
        %v463 = vpop.f32.mrb[0].mxu0
        %464 = vmatprep.mubr.bf16.mxu0 0
        %465 = vmatmul.mubr.bf16.gmra.mrb[0].mxu0 %v389
        %v466 = vpop.f32.mrb[0].mxu0
        %v467 = vadd.f32 0.0, %v466
        %v468 = vpop.f32.mrb[0].mxu0
        %v469 = vpop.f32.mrb[0].mxu0
        %v470 = vadd.f32 0.0, %v469
        %v471 = vpop.f32.mrb[0].mxu0
        %472 = vmatprep.mubr.bf16.mxu0 0
        %473 = vmatmul.mubr.bf16.gmra.mrb[0].mxu0 %v392
        %v474 = vpop.f32.mrb[0].mxu0
        %v475 = vadd.f32 0.0, %v474
        %v476 = vpop.f32.mrb[0].mxu0
        %v477 = vpop.f32.mrb[0].mxu0
        %v478 = vadd.f32 0.0, %v477
        %v479 = vpop.f32.mrb[0].mxu0
        %480 = vmatprep.mubr.bf16.mxu0 0
        %481 = vmatmul.mubr.bf16.gmra.mrb[0].mxu0 %v395
        %v482 = vpop.f32.mrb[0].mxu0
        %v483 = vadd.f32 0.0, %v482
        %v484 = vpop.f32.mrb[0].mxu0
        %v485 = vpop.f32.mrb[0].mxu0
        %v486 = vadd.f32 0.0, %v485
        %v487 = vpop.f32.mrb[0].mxu0
        %488 = vmatprep.mubr.bf16.mxu0 0
        %489 = vmatmul.mubr.bf16.gmra.mrb[0].mxu0 %v398
        %v490 = vpop.f32.mrb[0].mxu0
        %v491 = vadd.f32 0.0, %v490
        %v492 = vpop.f32.mrb[0].mxu0
        %v493 = vpop.f32.mrb[0].mxu0
        %v494 = vadd.f32 0.0, %v493
        %v495 = vpop.f32.mrb[0].mxu0
        %496 = vdwg.mxu0
        %vm497 = vcmask 523264
        %v498 = vsel %vm497, %v435, -inf
        %v499 = vsel %vm497, %v438, -inf
        %v500 = vmax.f32 %v498, %v499
        %v501 = vrot.slane %v500, 4
        %v502 = vmax.f32 %v500, %v501
        %v503 = vrot.slane %v502, 2
        %v504 = vmax.f32 %v502, %v503
        %v505 = vrot.slane %v504, 1
        %v506 = vmax.f32 %v504, %v505
        %v507 = vsel %vm497, %v443, -inf
        %v508 = vsel %vm497, %v446, -inf
        %v509 = vmax.f32 %v507, %v508
        %v510 = vrot.slane %v509, 4
        %v511 = vmax.f32 %v509, %v510
        %v512 = vrot.slane %v511, 2
        %v513 = vmax.f32 %v511, %v512
        %v514 = vrot.slane %v513, 1
        %v515 = vmax.f32 %v513, %v514
        %v516 = vsel %vm497, %v451, -inf
        %v517 = vsel %vm497, %v454, -inf
        %v518 = vmax.f32 %v516, %v517
        %v519 = vrot.slane %v518, 4
        %v520 = vmax.f32 %v518, %v519
        %v521 = vrot.slane %v520, 2
        %v522 = vmax.f32 %v520, %v521
        %v523 = vrot.slane %v522, 1
        %v524 = vmax.f32 %v522, %v523
        %v525 = vsel %vm497, %v459, -inf
        %v526 = vsel %vm497, %v462, -inf
        %v527 = vmax.f32 %v525, %v526
        %v528 = vrot.slane %v527, 4
        %v529 = vmax.f32 %v527, %v528
        %v530 = vrot.slane %v529, 2
        %v531 = vmax.f32 %v529, %v530
        %v532 = vrot.slane %v531, 1
        %v533 = vmax.f32 %v531, %v532
        %v534 = vsel %vm497, %v467, -inf
        %v535 = vsel %vm497, %v470, -inf
        %v536 = vmax.f32 %v534, %v535
        %v537 = vrot.slane %v536, 4
        %v538 = vmax.f32 %v536, %v537
        %v539 = vrot.slane %v538, 2
        %v540 = vmax.f32 %v538, %v539
        %v541 = vrot.slane %v540, 1
        %v542 = vmax.f32 %v540, %v541
        %v543 = vsel %vm497, %v475, -inf
        %v544 = vsel %vm497, %v478, -inf
        %v545 = vmax.f32 %v543, %v544
        %v546 = vrot.slane %v545, 4
        %v547 = vmax.f32 %v545, %v546
        %v548 = vrot.slane %v547, 2
        %v549 = vmax.f32 %v547, %v548
        %v550 = vrot.slane %v549, 1
        %v551 = vmax.f32 %v549, %v550
        %v552 = vsel %vm497, %v483, -inf
        %v553 = vsel %vm497, %v486, -inf
        %v554 = vmax.f32 %v552, %v553
        %v555 = vrot.slane %v554, 4
        %v556 = vmax.f32 %v554, %v555
        %v557 = vrot.slane %v556, 2
        %v558 = vmax.f32 %v556, %v557
        %v559 = vrot.slane %v558, 1
        %v560 = vmax.f32 %v558, %v559
        %v561 = vsel %vm497, %v491, -inf
        %v562 = vsel %vm497, %v494, -inf
        %v563 = vmax.f32 %v561, %v562
        %v564 = vrot.slane %v563, 4
        %v565 = vmax.f32 %v563, %v564
        %v566 = vrot.slane %v565, 2
        %v567 = vmax.f32 %v565, %v566
        %v568 = vrot.slane %v567, 1
        %v569 = vmax.f32 %v567, %v568
        %s570 = sld [smem:[#allocation2]]
        %v571 = vld [vmem:[%s2] sm:$0x1]
        %v573 = vlaneseq
        %v574 = vshrl.u32 %v573, 7
        %v575 = vsub.s32 0, %v574
        %v576 = vrot.slane %v571, %v575
        %v578 = vmul.f32 %v435, %v576
        %v579 = vmul.f32 %v438, %v576
        %v580 = vmul.f32 %v443, %v576
        %v581 = vmul.f32 %v446, %v576
        %v582 = vmul.f32 %v451, %v576
        %v583 = vmul.f32 %v454, %v576
        %v584 = vmul.f32 %v459, %v576
        %v585 = vmul.f32 %v462, %v576
        %v586 = vmul.f32 %v467, %v576
        %v587 = vmul.f32 %v470, %v576
        %v588 = vmul.f32 %v475, %v576
        %v589 = vmul.f32 %v478, %v576
        %v590 = vmul.f32 %v483, %v576
        %v591 = vmul.f32 %v486, %v576
        %v592 = vmul.f32 %v491, %v576
        %v593 = vmul.f32 %v494, %v576
        %v594 = vld [vmem:[%s3] sm:$0x1]
        %v596 = vlaneseq
        %v597 = vshrl.u32 %v596, 7
        %v598 = vsub.s32 0, %v597
        %v599 = vrot.slane %v594, %v598
        %v601 = vadd.f32 %v578, %v599
        %v602 = vadd.f32 %v579, %v599
        %v603 = vadd.f32 %v580, %v599
        %v604 = vadd.f32 %v581, %v599
        %v605 = vadd.f32 %v582, %v599
        %v606 = vadd.f32 %v583, %v599
        %v607 = vadd.f32 %v584, %v599
        %v608 = vadd.f32 %v585, %v599
        %v609 = vadd.f32 %v586, %v599
        %v610 = vadd.f32 %v587, %v599
        %v611 = vadd.f32 %v588, %v599
        %v612 = vadd.f32 %v589, %v599
        %v613 = vadd.f32 %v590, %v599
        %v614 = vadd.f32 %v591, %v599
        %v615 = vadd.f32 %v592, %v599
        %v616 = vadd.f32 %v593, %v599
        %vm617 = vcmp.gt.f32.partialorder %v601, 0.0
        %vm618 = vcmp.gt.f32.partialorder %v602, 0.0
        %vm619 = vcmp.gt.f32.partialorder %v603, 0.0
        %vm620 = vcmp.gt.f32.partialorder %v604, 0.0
        %vm621 = vcmp.gt.f32.partialorder %v605, 0.0
        %vm622 = vcmp.gt.f32.partialorder %v606, 0.0
        %vm623 = vcmp.gt.f32.partialorder %v607, 0.0
        %vm624 = vcmp.gt.f32.partialorder %v608, 0.0
        %vm625 = vcmp.gt.f32.partialorder %v609, 0.0
        %vm626 = vcmp.gt.f32.partialorder %v610, 0.0
        %vm627 = vcmp.gt.f32.partialorder %v611, 0.0
        %vm628 = vcmp.gt.f32.partialorder %v612, 0.0
        %vm629 = vcmp.gt.f32.partialorder %v613, 0.0
        %vm630 = vcmp.gt.f32.partialorder %v614, 0.0
        %vm631 = vcmp.gt.f32.partialorder %v615, 0.0
        %vm632 = vcmp.gt.f32.partialorder %v616, 0.0
        %v633 = vstv %s570
        %v634 = vmul.f32 %v633, %v601
        %v635 = vmul.f32 %v633, %v602
        %v636 = vmul.f32 %v633, %v603
        %v637 = vmul.f32 %v633, %v604
        %v638 = vmul.f32 %v633, %v605
        %v639 = vmul.f32 %v633, %v606
        %v640 = vmul.f32 %v633, %v607
        %v641 = vmul.f32 %v633, %v608
        %v642 = vmul.f32 %v633, %v609
        %v643 = vmul.f32 %v633, %v610
        %v644 = vmul.f32 %v633, %v611
        %v645 = vmul.f32 %v633, %v612
        %v646 = vmul.f32 %v633, %v613
        %v647 = vmul.f32 %v633, %v614
        %v648 = vmul.f32 %v633, %v615
        %v649 = vmul.f32 %v633, %v616
        %v650 = vsel %vm617, %v601, %v634
        %v651 = vsel %vm618, %v602, %v635
        %v652 = vsel %vm619, %v603, %v636
        %v653 = vsel %vm620, %v604, %v637
        %v654 = vsel %vm621, %v605, %v638
        %v655 = vsel %vm622, %v606, %v639
        %v656 = vsel %vm623, %v607, %v640
        %v657 = vsel %vm624, %v608, %v641
        %v658 = vsel %vm625, %v609, %v642
        %v659 = vsel %vm626, %v610, %v643
        %v660 = vsel %vm627, %v611, %v644
        %v661 = vsel %vm628, %v612, %v645
        %v662 = vsel %vm629, %v613, %v646
        %v663 = vsel %vm630, %v614, %v647
        %v664 = vsel %vm631, %v615, %v648
        %v665 = vsel %vm632, %v616, %v649
        %v666 = vpack.c.bf16 %v651, %v650
        %v667 = vpack.c.bf16 %v653, %v652
        %v668 = vpack.c.bf16 %v655, %v654
        %v669 = vpack.c.bf16 %v657, %v656
        %v670 = vpack.c.bf16 %v659, %v658
        %v671 = vpack.c.bf16 %v661, %v660
        %v672 = vpack.c.bf16 %v663, %v662
        %v673 = vpack.c.bf16 %v665, %v664
        %v674 = vld [vmem:[%s4] sm:$0x1]
        %v675 = vmul.f32 %v506, %v674
        %v676 = vmul.f32 %v515, %v674
        %v677 = vmul.f32 %v524, %v674
        %v678 = vmul.f32 %v533, %v674
        %v679 = vmul.f32 %v542, %v674
        %v680 = vmul.f32 %v551, %v674
        %v681 = vmul.f32 %v560, %v674
        %v682 = vmul.f32 %v569, %v674
        %v683 = vld [vmem:[%s5] sm:$0x1]
        %v684 = vadd.f32 %v675, %v683
        %v685 = vadd.f32 %v676, %v683
        %v686 = vadd.f32 %v677, %v683
        %v687 = vadd.f32 %v678, %v683
        %v688 = vadd.f32 %v679, %v683
        %v689 = vadd.f32 %v680, %v683
        %v690 = vadd.f32 %v681, %v683
        %v691 = vadd.f32 %v682, %v683
        %vm692 = vcmp.gt.f32.partialorder %v684, 0.0
        %vm693 = vcmp.gt.f32.partialorder %v685, 0.0
        %vm694 = vcmp.gt.f32.partialorder %v686, 0.0
        %vm695 = vcmp.gt.f32.partialorder %v687, 0.0
        %vm696 = vcmp.gt.f32.partialorder %v688, 0.0
        %vm697 = vcmp.gt.f32.partialorder %v689, 0.0
        %vm698 = vcmp.gt.f32.partialorder %v690, 0.0
        %vm699 = vcmp.gt.f32.partialorder %v691, 0.0
        %v700 = vmul.f32 %v633, %v684
        %v701 = vmul.f32 %v633, %v685
        %v702 = vmul.f32 %v633, %v686
        %v703 = vmul.f32 %v633, %v687
        %v704 = vmul.f32 %v633, %v688
        %v705 = vmul.f32 %v633, %v689
        %v706 = vmul.f32 %v633, %v690
        %v707 = vmul.f32 %v633, %v691
        %v708 = vsel %vm692, %v684, %v700
        %v709 = vsel %vm693, %v685, %v701
        %v710 = vsel %vm694, %v686, %v702
        %v711 = vsel %vm695, %v687, %v703
        %v712 = vsel %vm696, %v688, %v704
        %v713 = vsel %vm697, %v689, %v705
        %v714 = vsel %vm698, %v690, %v706
        %v715 = vsel %vm699, %v691, %v707
        %v716 = vpack.c.bf16 %v708, %v708
        %v717 = vpack.c.bf16 %v709, %v709
        %v718 = vpack.c.bf16 %v710, %v710
        %v719 = vpack.c.bf16 %v711, %v711
        %v720 = vpack.c.bf16 %v712, %v712
        %v721 = vpack.c.bf16 %v713, %v713
        %v722 = vpack.c.bf16 %v714, %v714
        %v723 = vpack.c.bf16 %v715, %v715
        %v725 = vpack.i.b16 %v716, %v716
        %v727 = vlaneseq
        %v728 = vshrl.u32 %v727, 7
        %v729 = vsub.s32 0, %v728
        %v730 = vrot.slane %v725, %v729
        %v732 = vpack.i.b16 %v717, %v717
        %v734 = vlaneseq
        %v735 = vshrl.u32 %v734, 7
        %v736 = vsub.s32 0, %v735
        %v737 = vrot.slane %v732, %v736
        %v739 = vpack.i.b16 %v718, %v718
        %v741 = vlaneseq
        %v742 = vshrl.u32 %v741, 7
        %v743 = vsub.s32 0, %v742
        %v744 = vrot.slane %v739, %v743
        %v746 = vpack.i.b16 %v719, %v719
        %v748 = vlaneseq
        %v749 = vshrl.u32 %v748, 7
        %v750 = vsub.s32 0, %v749
        %v751 = vrot.slane %v746, %v750
        %v753 = vpack.i.b16 %v720, %v720
        %v755 = vlaneseq
        %v756 = vshrl.u32 %v755, 7
        %v757 = vsub.s32 0, %v756
        %v758 = vrot.slane %v753, %v757
        %v760 = vpack.i.b16 %v721, %v721
        %v762 = vlaneseq
        %v763 = vshrl.u32 %v762, 7
        %v764 = vsub.s32 0, %v763
        %v765 = vrot.slane %v760, %v764
        %v767 = vpack.i.b16 %v722, %v722
        %v769 = vlaneseq
        %v770 = vshrl.u32 %v769, 7
        %v771 = vsub.s32 0, %v770
        %v772 = vrot.slane %v767, %v771
        %v774 = vpack.i.b16 %v723, %v723
        %v776 = vlaneseq
        %v777 = vshrl.u32 %v776, 7
        %v778 = vsub.s32 0, %v777
        %v779 = vrot.slane %v774, %v778
        %788 = vrot.lane.b32.xlu0 %v730, 64
        %v789 = vpop.permute.xlu0 %788
        %790 = vrot.lane.b32.xlu0 %v737, 64
        %v791 = vpop.permute.xlu0 %790
        %792 = vrot.lane.b32.xlu0 %v744, 64
        %v793 = vpop.permute.xlu0 %792
        %794 = vrot.lane.b32.xlu0 %v751, 64
        %v795 = vpop.permute.xlu0 %794
        %796 = vrot.lane.b32.xlu0 %v758, 64
        %v797 = vpop.permute.xlu0 %796
        %798 = vrot.lane.b32.xlu0 %v765, 64
        %v799 = vpop.permute.xlu0 %798
        %800 = vrot.lane.b32.xlu0 %v772, 64
        %v801 = vpop.permute.xlu0 %800
        %802 = vrot.lane.b32.xlu0 %v779, 64
        %v803 = vpop.permute.xlu0 %802
        %v806 = vsel %vm497, %v666, %v789
        %v809 = vsel %vm497, %v667, %v791
        %v812 = vsel %vm497, %v668, %v793
        %v815 = vsel %vm497, %v669, %v795
        %v818 = vsel %vm497, %v670, %v797
        %v821 = vsel %vm497, %v671, %v799
        %v824 = vsel %vm497, %v672, %v801
        %v827 = vsel %vm497, %v673, %v803
        %v836 = vunpack.c.l.b16 %v806
        %v837 = vunpack.c.h.b16 %v806
        %v838 = vunpack.c.l.b16 %v809
        %v839 = vunpack.c.h.b16 %v809
        %v840 = vunpack.c.l.b16 %v812
        %v841 = vunpack.c.h.b16 %v812
        %v842 = vunpack.c.l.b16 %v815
        %v843 = vunpack.c.h.b16 %v815
        %v844 = vunpack.c.l.b16 %v818
        %v845 = vunpack.c.h.b16 %v818
        %v846 = vunpack.c.l.b16 %v821
        %v847 = vunpack.c.h.b16 %v821
        %v848 = vunpack.c.l.b16 %v824
        %v849 = vunpack.c.h.b16 %v824
        %v850 = vunpack.c.l.b16 %v827
        %v851 = vunpack.c.h.b16 %v827
        %v852 = vpack.c.b16 %v836, %v836
        %v853 = vpack.c.b16 %v837, %v837
        %v854 = vpack.c.b16 %v838, %v838
        %v855 = vpack.c.b16 %v839, %v839
        %v856 = vpack.c.b16 %v840, %v840
        %v857 = vpack.c.b16 %v841, %v841
        %v858 = vpack.c.b16 %v842, %v842
        %v859 = vpack.c.b16 %v843, %v843
        %v860 = vpack.c.b16 %v844, %v844
        %v861 = vpack.c.b16 %v845, %v845
        %v862 = vpack.c.b16 %v846, %v846
        %v863 = vpack.c.b16 %v847, %v847
        %v864 = vpack.c.b16 %v848, %v848
        %v865 = vpack.c.b16 %v849, %v849
        %v866 = vpack.c.b16 %v850, %v850
        %v867 = vpack.c.b16 %v851, %v851
        %884 = vst [vmem:[%s331] sm:$0xf] %v852
        %885 = vst [vmem:[%s331 + $0x4] sm:$0xf] %v853
        %886 = vst [vmem:[%s331 + $0x8] sm:$0xf] %v854
        %887 = vst [vmem:[%s331 + $0xc] sm:$0xf] %v855
        %888 = vst [vmem:[%s331 + $0x10] sm:$0xf] %v856
        %889 = vst [vmem:[%s331 + $0x14] sm:$0xf] %v857
        %890 = vst [vmem:[%s331 + $0x18] sm:$0xf] %v858
        %891 = vst [vmem:[%s331 + $0x1c] sm:$0xf] %v859
        %892 = vst [vmem:[%s331 + $0x20] sm:$0xf] %v860
        %893 = vst [vmem:[%s331 + $0x24] sm:$0xf] %v861
        %894 = vst [vmem:[%s331 + $0x28] sm:$0xf] %v862
        %895 = vst [vmem:[%s331 + $0x2c] sm:$0xf] %v863
        %896 = vst [vmem:[%s331 + $0x30] sm:$0xf] %v864
        %897 = vst [vmem:[%s331 + $0x34] sm:$0xf] %v865
        %898 = vst [vmem:[%s331 + $0x38] sm:$0xf] %v866
        %899 = vst [vmem:[%s331 + $0x3c] sm:$0xf] %v867
        %s900 = sand.u32 %s202, 1
        %s901 = scalar_lea.sflag [#allocation5], %s900
        %s902 = sand.u32 %s202, 1
        %s903 = smul.addr %s902, 64
        %s904 = scalar_lea.vmem [#allocation8], %s903
        // Predicated region
        $region57: #{tpu_custom_call.1} parent=47 // pred_check
          %p905 = pneg %p212
        $region58: #{tpu_custom_call.1} parent=47 // pred_check_branch
          %907 = sbr.rel (%p905) target = $region60
        $region59: #{tpu_custom_call.1} parent=47 // pred_region
          %s908 = smul.u32 8, %s31
          %s910 = ssub.s32 1024, 1024
          %911 = vsyncadd %s901, %s910
          %s912 = smul.addr %s908, 2
          %s913 = smul.addr %s30, 16
          %s914 = sadd.s32 %s912, %s913
          %s915 = smul.addr %s914, 64
          %s916 = scalar_lea.hbm %s7, %s915
          %s917 = sshll.u32 %s904, 4
          %s918 = int_to_ptr.vmem [resolvable:$true] %s917
          %923 = dma.vmem_to_hbm [thread:$0]  %s918, 1024, %s916, %s901, 64, 64, 4
        $region60: #{tpu_custom_call.1} parent=47 // pred_fallthru
          _
      $region48: #{tpu_custom_call.1} parent=5 // pred_fallthru
        _
      %p924 = scmp.le.s32.totalorder 2, %s21
      // Predicated region
      $region61: #{tpu_custom_call.1} parent=5 // pred_check
        %p925 = pneg %p924
      $region62: #{tpu_custom_call.1} parent=5 // pred_check_branch
        %927 = sbr.rel (%p925) target = $region64
      $region63: #{tpu_custom_call.1} parent=5 // pred_region
        %s928 = ssub.s32 %s21, 2
        // Predicated region
        $region65: #{tpu_custom_call.1} parent=63 // pred_check
          %p929 = pneg %p218
        $region66: #{tpu_custom_call.1} parent=63 // pred_check_branch
          %931 = sbr.rel (%p929) target = $region68
        $region67: #{tpu_custom_call.1} parent=63 // pred_region
          %s932 = sand.u32 %s203, 1
          %s933 = scalar_lea.sflag [#allocation5], %s932
          %s934 = sand.u32 %s203, 1
          %s935 = smul.addr %s934, 64
          %s936 = scalar_lea.vmem [#allocation8], %s935
          %937 = dma.done %s933, 1024
        $region68: #{tpu_custom_call.1} parent=63 // pred_fallthru
          _
      $region64: #{tpu_custom_call.1} parent=5 // pred_fallthru
        _
    $region6: #{tpu_custom_call.1} parent=1 // loop_footer
      %s25 = sadd.s32 1, %s21
    $region7: #{tpu_custom_call.1} parent=1 // loop_footer_branch
      %20 = sbr.rel target = $region3
    $region8: #{tpu_custom_call.1} parent=1 // loop_exit
      _
    %938 = vsyncpa [#allocation4], 1
    %s939 = scalar_lea.sflag [#allocation4], 1
    %940 = vsyncpa %s939, 1
    %941 = vsyncpa [#allocation7], 1
    %942 = vsyncpa [#allocation5], 1
    %s943 = scalar_lea.sflag [#allocation5], 1
    %944 = vsyncpa %s943, 1

</llo_original>
